<compile_context>
chip_gen: v5e
topology: v5e:2x2
jax: 0.10.0
libtpu: 0.0.40
codegen_flags: <defaults>
</compile_context>

<pallas_src>
import jax
import jax.numpy as jnp
from jax import lax
from jax.experimental import pallas as pl
from jax.experimental.pallas import tpu as pltpu


def _resnet_decoder_kernel(x_ref, w_ref, b_ref, o_ref):
    # x_ref: (TN, C, H*W)  one batch tile (channels x flattened spatial)
    # w_ref: (C, K)        decoder weight, pre-transposed to (in_features, n_classes)
    # b_ref: (1, K)        decoder bias
    # o_ref: (TN, K)       logits for this batch tile
    x = x_ref[...].astype(jnp.float32)
    pooled = jnp.mean(x, axis=-1)                          # global avg pool -> (TN, C)
    logits = jnp.dot(
        pooled,
        w_ref[...].astype(jnp.float32),
        preferred_element_type=jnp.float32,
        precision=lax.Precision.HIGHEST,
    )                                                      # (TN, K) on the MXU
    o_ref[...] = (logits + b_ref[...]).astype(o_ref.dtype)


def _choose_batch_tile(n, c, hw, itemsize, budget_bytes=8 * 1024 * 1024):
    """Pick a batch tile whose (lane-padded) VMEM footprint stays small."""
    lanes = pl.cdiv(hw, 128) * 128          # VMEM pads the lane (last) dim to 128
    row_bytes = c * lanes * itemsize
    tile = max(1, budget_bytes // row_bytes)
    tile = min(tile, n, 1024)
    if tile < n:
        # second-to-last dim of the output block must be 8-aligned (f32) unless
        # it equals the full array dim.
        tile = max(8, (tile // 8) * 8)
    return int(tile)


def resnet_decoder_forward(x, dec_weight, dec_bias, *, block_n=None):
    """Pallas implementation of ResnetDecoder.forward.

    x:          (N, C, H, W) with C == in_features
    dec_weight: (n_classes, in_features)   (PyTorch nn.Linear layout)
    dec_bias:   (n_classes,)
    returns     (N, n_classes) with x.dtype
    """
    n, c, h, w = x.shape
    k, c_in = dec_weight.shape
    assert c_in == c, "decoder weight in_features must match channel count"
    hw = h * w

    x3 = x.reshape(n, c, hw)            # contiguous reshape: free in the wrapper
    wt = dec_weight.T                   # (C, K) so kernel computes pooled @ wt
    b2 = dec_bias.reshape(1, k)

    if block_n is None:
        block_n = _choose_batch_tile(n, c, hw, x.dtype.itemsize)

    grid = (pl.cdiv(n, block_n),)

    return pl.pallas_call(
        _resnet_decoder_kernel,
        out_shape=jax.ShapeDtypeStruct((n, k), x.dtype),
        grid=grid,
        in_specs=[
            pl.BlockSpec((block_n, c, hw), lambda i: (i, 0, 0)),  # batch tile
            pl.BlockSpec((c, k), lambda i: (0, 0)),               # weight, resident
            pl.BlockSpec((1, k), lambda i: (0, 0)),               # bias, resident
        ],
        out_specs=pl.BlockSpec((block_n, k), lambda i: (i, 0)),
        compiler_params=pltpu.CompilerParams(
            dimension_semantics=("parallel",),       # megacore-shard batch tiles
            vmem_limit_bytes=48 * 1024 * 1024,       # headroom, fits v7x's 64 MiB VMEM
        ),
    )(x3, wt, b2)


if __name__ == "__main__":
    key = jax.random.PRNGKey(0)
    k_x, k_w, k_b = jax.random.split(key, 3)

    batch, in_features, n_classes, spatial = 2, 32, 10, 7
    x = jax.random.normal(
        k_x, (batch, in_features, spatial, spatial), dtype=jnp.float32
    )
    bound = 1.0 / (in_features ** 0.5)
    dec_w = jax.random.uniform(
        k_w, (n_classes, in_features), jnp.float32, -bound, bound
    )
    dec_b = jax.random.uniform(k_b, (n_classes,), jnp.float32, -bound, bound)

    out = resnet_decoder_forward(x, dec_w, dec_b)
    out = jax.block_until_ready(out)

    # Reference: AdaptiveAvgPool2d((1,1)) -> Flatten -> decoder Linear.
    pooled_ref = jnp.mean(x, axis=(2, 3))
    ref = jnp.dot(pooled_ref, dec_w.T, precision=lax.Precision.HIGHEST) + dec_b

    assert out.shape == (batch, n_classes) and out.dtype == x.dtype
    assert jnp.allclose(out, ref, atol=1e-5, rtol=1e-5), float(
        jnp.max(jnp.abs(out - ref))
    )
    print("KERNEL_OK")
</pallas_src>

<mosaic_0001>
module attributes {stable_mosaic.version = 11 : i64} {
  func.func @_resnet_decoder_kernel(%arg0: i32, %arg1: memref<2x32x49xf32, #tpu.memory_space<vmem>>, %arg2: memref<32x10xf32, #tpu.memory_space<vmem>>, %arg3: memref<1x10xf32, #tpu.memory_space<vmem>>, %arg4: memref<2x10xf32, #tpu.memory_space<vmem>>) attributes {dimension_semantics = [#tpu.dimension_semantics<parallel>], iteration_bounds = array<i64: 1>, scalar_prefetch = 0 : i64, scratch_operands = 0 : i64, tpu.core_type = #tpu.core_type<tc>, window_params = [{transform_indices = @transform_0, window_bounds = array<i64: 2, 32, 49>}, {pipeline_mode = #tpu.pipeline_mode<synchronous>, transform_indices = @transform_1, window_bounds = array<i64: 32, 10>}, {pipeline_mode = #tpu.pipeline_mode<synchronous>, transform_indices = @transform_2, window_bounds = array<i64: 1, 10>}, {transform_indices = @transform_3, window_bounds = array<i64: 2, 10>}]} {
    %c0 = arith.constant 0 : index
    %c0_0 = arith.constant 0 : index
    %c0_1 = arith.constant 0 : index
    %0 = vector.load %arg1[%c0, %c0_0, %c0_1] : memref<2x32x49xf32, #tpu.memory_space<vmem>>, vector<2x32x49xf32>
    %cst = arith.constant dense<0.000000e+00> : vector<2x32xf32>
    %1 = vector.multi_reduction <add>, %0, %cst [2] : vector<2x32x49xf32> to vector<2x32xf32>
    %cst_2 = arith.constant 4.900000e+01 : f32
    %2 = vector.broadcast %cst_2 : f32 to vector<2x32xf32>
    %3 = arith.divf %1, %2 : vector<2x32xf32>
    %c0_3 = arith.constant 0 : index
    %c0_4 = arith.constant 0 : index
    %4 = vector.load %arg2[%c0_3, %c0_4] : memref<32x10xf32, #tpu.memory_space<vmem>>, vector<32x10xf32>
    %cst_5 = arith.constant dense<0.000000e+00> : vector<2x10xf32>
    %5 = tpu.matmul %3, %4, %cst_5 {dimension_numbers = #tpu.dot_dimension_numbers<[1], [0], [0], [1], [0, 0, 1, 1], [], []>, precision = #tpu.contract_precision<fp32>} : vector<2x32xf32>, vector<32x10xf32>, vector<2x10xf32> -> vector<2x10xf32>
    %c0_6 = arith.constant 0 : index
    %c0_7 = arith.constant 0 : index
    %6 = vector.load %arg3[%c0_6, %c0_7] : memref<1x10xf32, #tpu.memory_space<vmem>>, vector<1x10xf32>
    %7 = vector.broadcast %6 : vector<1x10xf32> to vector<2x10xf32>
    %8 = arith.addf %5, %7 : vector<2x10xf32>
    %c0_8 = arith.constant 0 : index
    %c0_9 = arith.constant 0 : index
    %9 = vector.load %arg4[%c0_8, %c0_9] : memref<2x10xf32, #tpu.memory_space<vmem>>, vector<2x10xf32>
    tpu.vector_store %arg4[%c0_8, %c0_9], %8 {strides = array<i32>} : memref<2x10xf32, #tpu.memory_space<vmem>>, vector<2x10xf32>,
    return
  }
  func.func @transform_0(%arg0: i32) -> (i32, i32, i32) {
    %c0_i32 = arith.constant 0 : i32
    %c0_i32_0 = arith.constant 0 : i32
    %c0_i32_1 = arith.constant 0 : i32
    return %arg0, %c0_i32, %c0_i32_0 : i32, i32, i32
  }
  func.func @transform_1(%arg0: i32) -> (i32, i32) {
    %c0_i32 = arith.constant 0 : i32
    %c0_i32_0 = arith.constant 0 : i32
    %c0_i32_1 = arith.constant 0 : i32
    return %c0_i32, %c0_i32_0 : i32, i32
  }
  func.func @transform_2(%arg0: i32) -> (i32, i32) {
    %c0_i32 = arith.constant 0 : i32
    %c0_i32_0 = arith.constant 0 : i32
    %c0_i32_1 = arith.constant 0 : i32
    return %c0_i32, %c0_i32_0 : i32, i32
  }
  func.func @transform_3(%arg0: i32) -> (i32, i32) {
    %c0_i32 = arith.constant 0 : i32
    %c0_i32_0 = arith.constant 0 : i32
    return %arg0, %c0_i32 : i32, i32
  }
}

</mosaic_0001>

<llo_original>
// kernel: tpu_custom_call.1
$region0: #{tpu_custom_call.1}
  #allocation0 [shape = 'u32[]', space=smem, size = 0x4, offset = 0x4, fixed_abs, tag = 'smem constant byte address 0x4 - core index']
  #allocation1 [shape = 'u32[72,128]{1,0:T(1,128)}', space=vmem, size = 0x9000, scoped, tag = 'internal scratch']
  %s0 = inlined_call_operand.hbm [shape: f32[2,32,49], index: 0, kind: input, shape index: {}]
  %s1 = inlined_call_operand.vmem [shape: f32[32,10], index: 1, kind: input, shape index: {}]
  %s2 = inlined_call_operand.vmem [shape: f32[1,10], index: 2, kind: input, shape index: {}]
  %s3 = inlined_call_operand.hbm [shape: f32[2,10], index: 3, kind: output, shape index: {}]
  %s4 = sld [smem:[#allocation0]]
  $region26: #{tpu_custom_call.1} parent=0
    _
  %s6 = ssub.s32 1, %s4
  %s7 = scalar_select 0, %s6, %s4
  $region1: #{tpu_custom_call.1} parent=0
    #allocation2 [shape = 'u8[32768]{0}', space=vmem, size = 0x8000, scoped, tag = 'input window, operand 0, single buffered']
    #allocation3 [shape = 's32[1]{0}', space=sflag, size = 0x4, scoped, tag = 'scoped memory for tpu_custom_call.1']
    #allocation4 [shape = 's32[1]{0}', space=sflag, size = 0x4, scoped, tag = 'scoped memory for tpu_custom_call.1']
    #allocation5 [shape = 'u8[1024]{0}', space=vmem, size = 0x400, scoped, tag = 'output window, operand 0, single buffered']
    %8 = vsyncpa [#allocation3], 0
    %9 = vsyncpa [#allocation4], 0
    // Predicated region
    $region2: #{tpu_custom_call.1} parent=1 // pred_check
      _
    $region3: #{tpu_custom_call.1} parent=1 // pred_check_branch
      %11 = sbr.rel (0) target = $region5
    $region4: #{tpu_custom_call.1} parent=1 // pred_region
      %13 = vsyncadd [#allocation3], 0
      %s14 = sshll.u32 %s0, 4
      %s15 = int_to_ptr.hbm [resolvable:$true] %s14
      %s16 = sshll.u32 [#allocation2], 4
      %s17 = int_to_ptr.vmem [resolvable:$true] %s16
      %22 = dma.hbm_to_vmem [thread:$0]  %s15, 1024, %s17, [#allocation3], 128, 128, 8
    $region5: #{tpu_custom_call.1} parent=1 // pred_fallthru
      _
    // Predicated region
    $region6: #{tpu_custom_call.1} parent=1 // pred_check
      _
    $region7: #{tpu_custom_call.1} parent=1 // pred_check_branch
      %24 = sbr.rel (0) target = $region9
    $region8: #{tpu_custom_call.1} parent=1 // pred_region
      _
    $region9: #{tpu_custom_call.1} parent=1 // pred_fallthru
      _
    // Predicated region
    $region10: #{tpu_custom_call.1} parent=1 // pred_check
      _
    $region11: #{tpu_custom_call.1} parent=1 // pred_check_branch
      %26 = sbr.rel (0) target = $region13
    $region12: #{tpu_custom_call.1} parent=1 // pred_region
      _
    $region13: #{tpu_custom_call.1} parent=1 // pred_fallthru
      _
    // Predicated region
    $region14: #{tpu_custom_call.1} parent=1 // pred_check
      _
    $region15: #{tpu_custom_call.1} parent=1 // pred_check_branch
      %28 = sbr.rel (0) target = $region17
    $region16: #{tpu_custom_call.1} parent=1 // pred_region
      %30 = dma.done [#allocation3], 1024
    $region17: #{tpu_custom_call.1} parent=1 // pred_fallthru
      _
    %v31 = vld [vmem:[#allocation2] sm:$0xff]
    %v32 = vld [vmem:[#allocation2 + $0x8] sm:$0xff]
    %v33 = vld [vmem:[#allocation2 + $0x10] sm:$0xff]
    %v34 = vld [vmem:[#allocation2 + $0x18] sm:$0xff]
    %v35 = vld [vmem:[#allocation2 + $0x20] sm:$0xff]
    %v36 = vld [vmem:[#allocation2 + $0x28] sm:$0xff]
    %v37 = vld [vmem:[#allocation2 + $0x30] sm:$0xff]
    %v38 = vld [vmem:[#allocation2 + $0x38] sm:$0xff]
    %vm39 = vcmask 400384
    %v40 = vsel %vm39, %v31, 0.0
    %41 = vadd.xlane.f32.xlu0 %v40
    %v42 = vpop.xlane.xlu0 %41
    %v43 = vsel %vm39, %v32, 0.0
    %44 = vadd.xlane.f32.xlu0 %v43
    %v45 = vpop.xlane.xlu0 %44
    %v46 = vsel %vm39, %v33, 0.0
    %47 = vadd.xlane.f32.xlu0 %v46
    %v48 = vpop.xlane.xlu0 %47
    %v49 = vsel %vm39, %v34, 0.0
    %50 = vadd.xlane.f32.xlu0 %v49
    %v51 = vpop.xlane.xlu0 %50
    %v52 = vsel %vm39, %v35, 0.0
    %53 = vadd.xlane.f32.xlu0 %v52
    %v54 = vpop.xlane.xlu0 %53
    %v55 = vsel %vm39, %v36, 0.0
    %56 = vadd.xlane.f32.xlu0 %v55
    %v57 = vpop.xlane.xlu0 %56
    %v58 = vsel %vm39, %v37, 0.0
    %59 = vadd.xlane.f32.xlu0 %v58
    %v60 = vpop.xlane.xlu0 %59
    %v61 = vsel %vm39, %v38, 0.0
    %62 = vadd.xlane.f32.xlu0 %v61
    %v63 = vpop.xlane.xlu0 %62
    %v64 = vrcp.pop 49.0
    %v65 = vmul.f32 49.0, %v64
    %v66 = vsub.f32 1.0, %v65
    %v67 = vmul.f32 %v64, %v66
    %v68 = vadd.f32 %v64, %v67
    %vm69 = vweird.f32 %v64
    %v70 = vsel %vm69, %v64, %v68
    %v71 = vmul.f32 %v42, %v70
    %v72 = vmul.f32 %v45, %v70
    %v73 = vmul.f32 %v48, %v70
    %v74 = vmul.f32 %v51, %v70
    %v75 = vmul.f32 %v54, %v70
    %v76 = vmul.f32 %v57, %v70
    %v77 = vmul.f32 %v60, %v70
    %v78 = vmul.f32 %v63, %v70
    %v79 = vld [vmem:[%s1] sm:$0xff]
    %v80 = vld [vmem:[%s1 + $0x8] sm:$0xff]
    %v81 = vld [vmem:[%s1 + $0x10] sm:$0xff]
    %v82 = vld [vmem:[%s1 + $0x18] sm:$0xff]
    %v83 = vld [vmem:[%s2] sm:$0x1]
    %v85 = vperm.slane %v83, 0
    %v95 = vlaneseq
    %v96 = vand.u32 %v95, 127
    %v97 = vperm.slane %v71, %v96
    %v98 = vadd.s32 %v96, 4294967288
    %v99 = vperm.slane %v72, %v98
    %vm100 = vcmask 130112
    %v101 = vsel %vm100, %v99, %v97
    %v102 = vadd.s32 %v96, 4294967280
    %v103 = vperm.slane %v73, %v102
    %vm104 = vcmask 195712
    %v105 = vsel %vm104, %v103, %v101
    %v106 = vadd.s32 %v96, 4294967272
    %v107 = vperm.slane %v74, %v106
    %vm108 = vcmask 261312
    %v109 = vsel %vm108, %v107, %v105
    %v110 = vperm.slane %v75, %v96
    %v111 = vperm.slane %v76, %v98
    %v112 = vsel %vm100, %v111, %v110
    %v113 = vperm.slane %v77, %v102
    %v114 = vsel %vm104, %v113, %v112
    %v115 = vperm.slane %v78, %v106
    %v116 = vsel %vm108, %v115, %v114
    %vm117 = vcmask 1041409
    %v118 = vsel %vm117, %v116, %v109
    %vm119 = vcmask 261120
    %v120 = vsel %vm119, %v118, 0
    %122 = vmatpush.msra.mxu0 0.0
    %123 = vmatpush.msra.mxu0 0.0
    %124 = vmatpush.msra.mxu0 0.0
    %125 = vmatpush.msra.mxu0 0.0
    %126 = vmatpush.msra.mxu0 0.0
    %127 = vmatpush.msra.mxu0 0.0
    %128 = vmatpush.msra.mxu0 0.0
    %129 = vmatpush.msra.mxu0 0.0
    %130 = vmatpush.msra.mxu0 0.0
    %131 = vmatpush.msra.mxu0 0.0
    %132 = vmatpush.msra.mxu0 0.0
    %133 = vmatpush.msra.mxu0 0.0
    %v134 = vand.u32 %v82, 4294901760
    %135 = vmatpush.msra.mxu0 %v134
    %v136 = vand.u32 %v81, 4294901760
    %137 = vmatpush.msra.mxu0 %v136
    %v138 = vand.u32 %v80, 4294901760
    %139 = vmatpush.msra.mxu0 %v138
    %v140 = vand.u32 %v79, 4294901760
    %141 = vmatpush.msra.mxu0 %v140
    %v142 = vand.u32 %v120, 4294901760
    %v143 = vsub.f32 %v120, %v142
    %v144 = vand.u32 %v143, 4294901760
    %v145 = vsub.f32 %v143, %v144
    %v146 = vand.u32 %v145, 4294901760
    %147 = vmatmul.f32.gmra.mxu0 %v146
    %v148 = vpop.f32.mrf.mxu0
    %v149 = vadd.f32 %v85, %v148
    %150 = vdwg.mxu0
    %151 = vmatpush.msra.mxu0 0.0
    %152 = vmatpush.msra.mxu0 0.0
    %153 = vmatpush.msra.mxu0 0.0
    %154 = vmatpush.msra.mxu0 0.0
    %155 = vmatpush.msra.mxu0 0.0
    %156 = vmatpush.msra.mxu0 0.0
    %157 = vmatpush.msra.mxu0 0.0
    %158 = vmatpush.msra.mxu0 0.0
    %159 = vmatpush.msra.mxu0 0.0
    %160 = vmatpush.msra.mxu0 0.0
    %161 = vmatpush.msra.mxu0 0.0
    %162 = vmatpush.msra.mxu0 0.0
    %v163 = vand.u32 %v82, 4294901760
    %v164 = vsub.f32 %v82, %v163
    %v165 = vand.u32 %v164, 4294901760
    %v166 = vsub.f32 %v164, %v165
    %v167 = vand.u32 %v166, 4294901760
    %168 = vmatpush.msra.mxu0 %v167
    %v169 = vand.u32 %v81, 4294901760
    %v170 = vsub.f32 %v81, %v169
    %v171 = vand.u32 %v170, 4294901760
    %v172 = vsub.f32 %v170, %v171
    %v173 = vand.u32 %v172, 4294901760
    %174 = vmatpush.msra.mxu0 %v173
    %v175 = vand.u32 %v80, 4294901760
    %v176 = vsub.f32 %v80, %v175
    %v177 = vand.u32 %v176, 4294901760
    %v178 = vsub.f32 %v176, %v177
    %v179 = vand.u32 %v178, 4294901760
    %180 = vmatpush.msra.mxu0 %v179
    %v181 = vand.u32 %v79, 4294901760
    %v182 = vsub.f32 %v79, %v181
    %v183 = vand.u32 %v182, 4294901760
    %v184 = vsub.f32 %v182, %v183
    %v185 = vand.u32 %v184, 4294901760
    %186 = vmatpush.msra.mxu0 %v185
    %v187 = vand.u32 %v120, 4294901760
    %188 = vmatmul.f32.gmra.mxu0 %v187
    %v189 = vpop.f32.mrf.mxu0
    %v190 = vadd.f32 %v149, %v189
    %191 = vdwg.mxu0
    %192 = vmatpush.msra.mxu0 0.0
    %193 = vmatpush.msra.mxu0 0.0
    %194 = vmatpush.msra.mxu0 0.0
    %195 = vmatpush.msra.mxu0 0.0
    %196 = vmatpush.msra.mxu0 0.0
    %197 = vmatpush.msra.mxu0 0.0
    %198 = vmatpush.msra.mxu0 0.0
    %199 = vmatpush.msra.mxu0 0.0
    %200 = vmatpush.msra.mxu0 0.0
    %201 = vmatpush.msra.mxu0 0.0
    %202 = vmatpush.msra.mxu0 0.0
    %203 = vmatpush.msra.mxu0 0.0
    %v204 = vand.u32 %v82, 4294901760
    %v205 = vsub.f32 %v82, %v204
    %206 = vmatpush.msra.mxu0 %v205
    %v207 = vand.u32 %v81, 4294901760
    %v208 = vsub.f32 %v81, %v207
    %209 = vmatpush.msra.mxu0 %v208
    %v210 = vand.u32 %v80, 4294901760
    %v211 = vsub.f32 %v80, %v210
    %212 = vmatpush.msra.mxu0 %v211
    %v213 = vand.u32 %v79, 4294901760
    %v214 = vsub.f32 %v79, %v213
    %215 = vmatpush.msra.mxu0 %v214
    %v216 = vand.u32 %v120, 4294901760
    %v217 = vsub.f32 %v120, %v216
    %218 = vmatmul.f32.gmra.mxu0 %v217
    %v219 = vpop.f32.mrf.mxu0
    %v220 = vadd.f32 %v190, %v219
    %221 = vdwg.mxu0
    %222 = vmatpush.msra.mxu0 0.0
    %223 = vmatpush.msra.mxu0 0.0
    %224 = vmatpush.msra.mxu0 0.0
    %225 = vmatpush.msra.mxu0 0.0
    %226 = vmatpush.msra.mxu0 0.0
    %227 = vmatpush.msra.mxu0 0.0
    %228 = vmatpush.msra.mxu0 0.0
    %229 = vmatpush.msra.mxu0 0.0
    %230 = vmatpush.msra.mxu0 0.0
    %231 = vmatpush.msra.mxu0 0.0
    %232 = vmatpush.msra.mxu0 0.0
    %233 = vmatpush.msra.mxu0 0.0
    %v234 = vand.u32 %v82, 4294901760
    %235 = vmatpush.msra.mxu0 %v234
    %v236 = vand.u32 %v81, 4294901760
    %237 = vmatpush.msra.mxu0 %v236
    %v238 = vand.u32 %v80, 4294901760
    %239 = vmatpush.msra.mxu0 %v238
    %v240 = vand.u32 %v79, 4294901760
    %241 = vmatpush.msra.mxu0 %v240
    %v242 = vand.u32 %v120, 4294901760
    %v243 = vsub.f32 %v120, %v242
    %v244 = vand.u32 %v243, 4294901760
    %245 = vmatmul.f32.gmra.mxu0 %v244
    %v246 = vpop.f32.mrf.mxu0
    %v247 = vadd.f32 %v220, %v246
    %248 = vdwg.mxu0
    %249 = vmatpush.msra.mxu0 0.0
    %250 = vmatpush.msra.mxu0 0.0
    %251 = vmatpush.msra.mxu0 0.0
    %252 = vmatpush.msra.mxu0 0.0
    %253 = vmatpush.msra.mxu0 0.0
    %254 = vmatpush.msra.mxu0 0.0
    %255 = vmatpush.msra.mxu0 0.0
    %256 = vmatpush.msra.mxu0 0.0
    %257 = vmatpush.msra.mxu0 0.0
    %258 = vmatpush.msra.mxu0 0.0
    %259 = vmatpush.msra.mxu0 0.0
    %260 = vmatpush.msra.mxu0 0.0
    %v261 = vand.u32 %v82, 4294901760
    %v262 = vsub.f32 %v82, %v261
    %v263 = vand.u32 %v262, 4294901760
    %264 = vmatpush.msra.mxu0 %v263
    %v265 = vand.u32 %v81, 4294901760
    %v266 = vsub.f32 %v81, %v265
    %v267 = vand.u32 %v266, 4294901760
    %268 = vmatpush.msra.mxu0 %v267
    %v269 = vand.u32 %v80, 4294901760
    %v270 = vsub.f32 %v80, %v269
    %v271 = vand.u32 %v270, 4294901760
    %272 = vmatpush.msra.mxu0 %v271
    %v273 = vand.u32 %v79, 4294901760
    %v274 = vsub.f32 %v79, %v273
    %v275 = vand.u32 %v274, 4294901760
    %276 = vmatpush.msra.mxu0 %v275
    %v277 = vand.u32 %v120, 4294901760
    %278 = vmatmul.f32.gmra.mxu0 %v277
    %v279 = vpop.f32.mrf.mxu0
    %v280 = vadd.f32 %v247, %v279
    %281 = vdwg.mxu0
    %282 = vmatpush.msra.mxu0 0.0
    %283 = vmatpush.msra.mxu0 0.0
    %284 = vmatpush.msra.mxu0 0.0
    %285 = vmatpush.msra.mxu0 0.0
    %286 = vmatpush.msra.mxu0 0.0
    %287 = vmatpush.msra.mxu0 0.0
    %288 = vmatpush.msra.mxu0 0.0
    %289 = vmatpush.msra.mxu0 0.0
    %290 = vmatpush.msra.mxu0 0.0
    %291 = vmatpush.msra.mxu0 0.0
    %292 = vmatpush.msra.mxu0 0.0
    %293 = vmatpush.msra.mxu0 0.0
    %v294 = vand.u32 %v82, 4294901760
    %295 = vmatpush.msra.mxu0 %v294
    %v296 = vand.u32 %v81, 4294901760
    %297 = vmatpush.msra.mxu0 %v296
    %v298 = vand.u32 %v80, 4294901760
    %299 = vmatpush.msra.mxu0 %v298
    %v300 = vand.u32 %v79, 4294901760
    %301 = vmatpush.msra.mxu0 %v300
    %v302 = vand.u32 %v120, 4294901760
    %303 = vmatmul.f32.gmra.mxu0 %v302
    %v304 = vpop.f32.mrf.mxu0
    %v305 = vadd.f32 %v280, %v304
    %306 = vdwg.mxu0
    %vm307 = vcmask 74752
    %308 = vst.msk [vmem:[#allocation5] sm:$0x3] %vm307, %v305
    // Predicated region
    $region18: #{tpu_custom_call.1} parent=1 // pred_check
      _
    $region19: #{tpu_custom_call.1} parent=1 // pred_check_branch
      %310 = sbr.rel (0) target = $region21
    $region20: #{tpu_custom_call.1} parent=1 // pred_region
      %312 = vsyncadd [#allocation4], 0
      %s314 = sshll.u32 [#allocation5], 4
      %s315 = int_to_ptr.vmem [resolvable:$true] %s314
      %s316 = sshll.u32 %s3, 4
      %s317 = int_to_ptr.hbm [resolvable:$true] %s316
      %319 = dma.vmem_to_hbm [thread:$0]  %s315, 32, %s317, [#allocation4]
    $region21: #{tpu_custom_call.1} parent=1 // pred_fallthru
      _
    // Predicated region
    $region22: #{tpu_custom_call.1} parent=1 // pred_check
      _
    $region23: #{tpu_custom_call.1} parent=1 // pred_check_branch
      %321 = sbr.rel (0) target = $region25
    $region24: #{tpu_custom_call.1} parent=1 // pred_region
      %323 = dma.done [#allocation4], 32
    $region25: #{tpu_custom_call.1} parent=1 // pred_fallthru
      _
    %324 = vsyncpa [#allocation3], 1
    %325 = vsyncpa [#allocation4], 1

</llo_original>
